<compile_context>
chip_gen: v6e
topology: v6e:2x2x1
jax: 0.10.0
libtpu: 0.0.40
codegen_flags: <defaults>
</compile_context>

<pallas_src>
import functools

import jax
import jax.numpy as jnp
from jax import lax
from jax.experimental import pallas as pl
from jax.experimental.pallas import tpu as pltpu

_LANE = 128
_NEG = -1e30  # finite sentinel written to padded class lanes


def _round_up(v, m):
    return ((v + m - 1) // m) * m


def _pad_to(a, rows, cols):
    return jnp.pad(a, ((0, rows - a.shape[0]), (0, cols - a.shape[1])))


# ---------------------------------------------------------------------------
# Fused single-call kernel (small graphs: bf16 C fits VMEM, read from HBM once)
# ---------------------------------------------------------------------------
def _gsgnet_fused_kernel(c_ref, invd_ref, x_ref, w1_ref, w2_ref, b_ref, o_ref, *,
                         hidden_pad, class_pad, num_classes):
    c = c_ref[...]        # (N, N)     bf16 edge counts (small ints, exact in bf16)
    invd = invd_ref[...]  # (N, 1)     f32  1/in_degree (0 for isolated nodes)
    x = x_ref[...]        # (N, F)     bf16
    w1 = w1_ref[...]      # (F, 2*HP)  bf16  [W1_l | W1_r], halves lane-padded
    w2 = w2_ref[...]      # (HP, 2*OP) bf16  [W2_l | W2_r]
    b1 = b_ref[0:1, :hidden_pad]   # (1, HP) f32
    b2 = b_ref[1:2, :class_pad]    # (1, OP) f32

    hp, op = hidden_pad, class_pad

    # ---- SAGEConv #1 (re-associated): h1 = invd*(C @ (X @ W1_l)) + X @ W1_r + b1 ----
    y1 = jnp.dot(x, w1, preferred_element_type=jnp.float32)                  # (N, 2*HP)
    n1 = jnp.dot(c, y1[:, :hp].astype(jnp.bfloat16),
                 preferred_element_type=jnp.float32)                         # (N, HP)
    h1 = jnp.maximum(invd * n1 + y1[:, hp:] + b1, 0.0)                       # ReLU
    # Dropout(p=0.5, training=False) -> identity in eval mode.
    # TODO(synk): training-mode dropout would use pltpu.prng_seed / prng_random_bits.

    # ---- SAGEConv #2 ----
    y2 = jnp.dot(h1.astype(jnp.bfloat16), w2, preferred_element_type=jnp.float32)
    n2 = jnp.dot(c, y2[:, :op].astype(jnp.bfloat16),
                 preferred_element_type=jnp.float32)
    h2 = invd * n2 + y2[:, op:] + b2                                         # (N, OP)

    # ---- masked log_softmax over the first num_classes lanes ----
    col = lax.broadcasted_iota(jnp.int32, h2.shape, 1)
    valid = col < num_classes
    m = jnp.max(jnp.where(valid, h2, _NEG), axis=1, keepdims=True)
    z = h2 - m
    lse = jnp.log(jnp.sum(jnp.where(valid, jnp.exp(z), 0.0), axis=1, keepdims=True))
    o_ref[...] = jnp.where(valid, z - lse, _NEG)


# ---------------------------------------------------------------------------
# Row-tiled per-layer kernel (large graphs: grid over row tiles of C)
# ---------------------------------------------------------------------------
def _sage_layer_kernel(c_ref, invd_ref, xt_ref, xf_ref, w_ref, b_ref, o_ref, *,
                       out_pad, num_valid, final_layer):
    c = c_ref[...]        # (TM, N)    bf16 count tile
    invd = invd_ref[...]  # (TM, 1)    f32
    xt = xt_ref[...]      # (TM, F)    bf16  this row tile (root / self path)
    xf = xf_ref[...]      # (N, F)     bf16  all rows (neighbor path, VMEM-resident)
    w = w_ref[...]        # (F, 2*OP)  bf16  [W_l | W_r]
    b = b_ref[...]        # (1, OP)    f32

    op = out_pad
    agg = jnp.dot(c, xf, preferred_element_type=jnp.float32)    # (TM, F) = C_tile @ X
    agg = (invd * agg).astype(jnp.bfloat16)                     # mean aggregation (VPU, f32 1/deg)
    h = (jnp.dot(agg, w[:, :op], preferred_element_type=jnp.float32)
         + jnp.dot(xt, w[:, op:], preferred_element_type=jnp.float32)
         + b)

    if final_layer:
        col = lax.broadcasted_iota(jnp.int32, h.shape, 1)
        valid = col < num_valid
        m = jnp.max(jnp.where(valid, h, _NEG), axis=1, keepdims=True)
        z = h - m
        lse = jnp.log(jnp.sum(jnp.where(valid, jnp.exp(z), 0.0), axis=1, keepdims=True))
        o_ref[...] = jnp.where(valid, z - lse, _NEG).astype(o_ref.dtype)
    else:
        # ReLU; dropout(p=0.5) is identity in eval mode.
        o_ref[...] = jnp.maximum(h, 0.0).astype(o_ref.dtype)


def _sage_layer_tiled(counts_bf, inv_deg, x_in, w_cat, b, *, row_tile, out_pad,
                      num_valid, final_layer, out_dtype):
    npad = counts_bf.shape[0]
    f = x_in.shape[1]
    grid = (npad // row_tile,)
    out_itemsize = 2 if out_dtype == jnp.bfloat16 else 4

    per_step_bytes = (2 * row_tile * npad * 2          # C tile, double buffered
                      + npad * f * 2                   # full x (resident, constant index)
                      + w_cat.size * 2 + b.size * 4
                      + 2 * row_tile * (f + 1) * 4
                      + 2 * row_tile * out_pad * out_itemsize
                      + 4 * row_tile * out_pad * 4)    # f32 intermediates
    vmem_limit = int(min(60 << 20, max(32 << 20, 2 * per_step_bytes)))
    flops = 2 * (npad * npad * f + 2 * npad * f * out_pad)
    bytes_accessed = (counts_bf.size * 2 + inv_deg.size * 4
                      + 2 * x_in.size * x_in.dtype.itemsize
                      + w_cat.size * 2 + b.size * 4 + npad * out_pad * out_itemsize)

    kernel = functools.partial(_sage_layer_kernel, out_pad=out_pad,
                               num_valid=num_valid, final_layer=final_layer)
    return pl.pallas_call(
        kernel,
        out_shape=jax.ShapeDtypeStruct((npad, out_pad), out_dtype),
        grid=grid,
        in_specs=[
            pl.BlockSpec((row_tile, npad), lambda i: (i, 0)),     # C row tile
            pl.BlockSpec((row_tile, 1), lambda i: (i, 0)),        # inv_deg tile
            pl.BlockSpec((row_tile, f), lambda i: (i, 0)),        # x tile (root path)
            pl.BlockSpec((npad, f), lambda i: (0, 0)),            # x full (neighbors)
            pl.BlockSpec((f, 2 * out_pad), lambda i: (0, 0)),     # packed [W_l | W_r]
            pl.BlockSpec((1, out_pad), lambda i: (0, 0)),         # bias
        ],
        out_specs=pl.BlockSpec((row_tile, out_pad), lambda i: (i, 0)),
        compiler_params=pltpu.CompilerParams(
            dimension_semantics=("parallel",),                    # both TCs on v7x
            vmem_limit_bytes=vmem_limit),
        cost_estimate=pl.CostEstimate(
            flops=int(flops),
            transcendentals=int(npad * out_pad if final_layer else 0),
            bytes_accessed=int(bytes_accessed)),
    )(counts_bf, inv_deg, x_in, x_in, w_cat, b)


# ---------------------------------------------------------------------------
# Forward wrapper
# ---------------------------------------------------------------------------
def gsgnet_forward(counts, inv_deg, x, params, *, mode="auto", row_tile=128,
                   trim_output=True, fused_vmem_budget=40 << 20):
    """GSGNet forward.

    counts : (N, N) f32 edge-count matrix, counts[i, j] = #edges j->i
    inv_deg: (N, 1) f32 inverse in-degree (0 for isolated nodes)
    x      : (N, F) f32 node features
    """
    n, f = x.shape
    hid = params["w1l"].shape[1]      # 40
    out = params["w2l"].shape[1]      # 24
    hp = _round_up(hid, _LANE)        # 128
    op = _round_up(out, _LANE)        # 128
    bp = max(hp, op)

    # Packed lane-padded weights: each half zero-padded to a 128-lane boundary so the
    # in-kernel static slices are vreg-aligned.
    w1cat = jnp.concatenate([_pad_to(params["w1l"], f, hp),
                             _pad_to(params["w1r"], f, hp)], axis=1).astype(jnp.bfloat16)
    w2cat = jnp.concatenate([_pad_to(params["w2l"], hp, op),
                             _pad_to(params["w2r"], hp, op)], axis=1).astype(jnp.bfloat16)
    b1p = _pad_to(params["b1"], 1, hp).astype(jnp.float32)
    b2p = _pad_to(params["b2"], 1, op).astype(jnp.float32)

    counts_bf = counts.astype(jnp.bfloat16)       # small integer counts: exact in bf16
    inv_deg = inv_deg.astype(jnp.float32).reshape(n, 1)
    x_bf = x.astype(jnp.bfloat16)

    fused_bytes = (counts_bf.size * 2 + inv_deg.size * 4 + x_bf.size * 2
                   + w1cat.size * 2 + w2cat.size * 2 + 2 * bp * 4
                   + n * (3 * hp + 4 * op) * 4)
    if mode == "auto":
        mode = "fused" if fused_bytes <= fused_vmem_budget else "tiled"

    if mode == "fused":
        bias = jnp.concatenate([_pad_to(b1p, 1, bp), _pad_to(b2p, 1, bp)], axis=0)
        flops = 2 * (n * f * 2 * hp + n * n * hp + n * hp * 2 * op + n * n * op)
        bytes_accessed = (counts_bf.size * 2 + inv_deg.size * 4 + x_bf.size * 2
                          + w1cat.size * 2 + w2cat.size * 2 + bias.size * 4 + n * op * 4)
        vmem = pl.BlockSpec(memory_space=pltpu.MemorySpace.VMEM)
        out_padded = pl.pallas_call(
            functools.partial(_gsgnet_fused_kernel, hidden_pad=hp, class_pad=op,
                              num_classes=out),
            out_shape=jax.ShapeDtypeStruct((n, op), jnp.float32),
            in_specs=[vmem] * 6,
            out_specs=vmem,
            compiler_params=pltpu.CompilerParams(
                vmem_limit_bytes=int(min(60 << 20, max(32 << 20, 2 * fused_bytes)))),
            cost_estimate=pl.CostEstimate(flops=int(flops),
                                          transcendentals=int(n * op),
                                          bytes_accessed=int(bytes_accessed)),
        )(counts_bf, inv_deg, x_bf, w1cat, w2cat, bias)
    else:
        npad = _round_up(n, row_tile)
        counts_p = jnp.pad(counts_bf, ((0, npad - n), (0, npad - n)))
        invd_p = jnp.pad(inv_deg, ((0, npad - n), (0, 0)))
        x_p = jnp.pad(x_bf, ((0, npad - n), (0, 0)))
        h1 = _sage_layer_tiled(counts_p, invd_p, x_p, w1cat, b1p,
                               row_tile=row_tile, out_pad=hp, num_valid=hid,
                               final_layer=False, out_dtype=jnp.bfloat16)
        out_padded = _sage_layer_tiled(counts_p, invd_p, h1, w2cat, b2p,
                                       row_tile=row_tile, out_pad=op, num_valid=out,
                                       final_layer=True, out_dtype=jnp.float32)[:n]

    # TODO(synk): for batches of tiny graphs, add a leading "parallel" grid axis
    # (block-diagonal C / batch dim) instead of one pallas_call per graph.
    if trim_output:
        # NOTE(perf): this slice is an extra HBM round-trip; perf-sensitive consumers
        # should take the lane-dense (N, 128) padded output (padded lanes = -1e30)
        # with trim_output=False and mask / fuse downstream instead.
        return out_padded[:, :out]
    return out_padded


# ---------------------------------------------------------------------------
# Graph operands, params, references
# ---------------------------------------------------------------------------
def build_graph_operands(edge_index, num_nodes):
    """Dense count matrix C[i, j] = #edges j->i and f32 inverse in-degree vector."""
    # TODO(synk): for production graphs replace the dense O(N^2) C with a CSR
    # (row-ptr / neighbor-id) scalar-prefetch gather kernel via PrefetchScalarGridSpec.
    src, dst = edge_index[0], edge_index[1]
    counts = jnp.zeros((num_nodes, num_nodes), jnp.float32).at[dst, src].add(1.0)
    deg = jnp.sum(counts, axis=1, keepdims=True)
    inv_deg = jnp.where(deg > 0, 1.0 / jnp.maximum(deg, 1.0), 0.0)
    return counts, inv_deg


def init_params(key, in_feats, hidden=40, out_feats=24):
    ks = jax.random.split(key, 4)

    def glorot(k, shape):
        fan_in, fan_out = shape
        lim = (6.0 / (fan_in + fan_out)) ** 0.5
        return jax.random.uniform(k, shape, jnp.float32, -lim, lim)

    return {
        "w1l": glorot(ks[0], (in_feats, hidden)),
        "w1r": glorot(ks[1], (in_feats, hidden)),
        "b1":  jnp.zeros((1, hidden), jnp.float32),
        "w2l": glorot(ks[2], (hidden, out_feats)),
        "w2r": glorot(ks[3], (hidden, out_feats)),
        "b2":  jnp.zeros((1, out_feats), jnp.float32),
    }


def reference_forward_f32(counts, inv_deg, x, p):
    """Original full-f32 module semantics."""
    agg = inv_deg * counts
    h1 = jnp.maximum(agg @ x @ p["w1l"] + p["b1"] + x @ p["w1r"], 0.0)
    h2 = agg @ h1 @ p["w2l"] + p["b2"] + h1 @ p["w2r"]
    return jax.nn.log_softmax(h2, axis=1)


def reference_forward_fused_precision(counts, inv_deg, x, p):
    """Mirrors the fused kernel's bf16-input / f32-accumulate / f32-1/deg path."""
    bf = lambda t: t.astype(jnp.bfloat16).astype(jnp.float32)
    xb, cb = bf(x), bf(counts)
    h1 = jnp.maximum(inv_deg * (cb @ bf(xb @ bf(p["w1l"])))
                     + xb @ bf(p["w1r"]) + p["b1"], 0.0)
    h1b = bf(h1)
    h2 = inv_deg * (cb @ bf(h1b @ bf(p["w2l"]))) + h1b @ bf(p["w2r"]) + p["b2"]
    return jax.nn.log_softmax(h2, axis=1)


def reference_forward_tiled_precision(counts, inv_deg, x, p):
    """Mirrors the row-tiled two-call path (aggregate-then-project ordering)."""
    bf = lambda t: t.astype(jnp.bfloat16).astype(jnp.float32)
    xb, cb = bf(x), bf(counts)
    agg1 = bf(inv_deg * (cb @ xb))
    h1 = jnp.maximum(agg1 @ bf(p["w1l"]) + xb @ bf(p["w1r"]) + p["b1"], 0.0)
    h1b = bf(h1)
    agg2 = bf(inv_deg * (cb @ h1b))
    h2 = agg2 @ bf(p["w2l"]) + h1b @ bf(p["w2r"]) + p["b2"]
    return jax.nn.log_softmax(h2, axis=1)


if __name__ == "__main__":
    key = jax.random.PRNGKey(0)
    k_x1, k_e1, k_p, k_x2, k_e2 = jax.random.split(key, 5)

    in_feats = 32          # training_set.num_node_features

    params = init_params(k_p, in_feats)

    # ---- small graph: fused single-call path ----
    n1, n_edges1 = 64, 128
    x1 = jax.random.normal(k_x1, (n1, in_feats), jnp.float32)
    e1 = jax.random.randint(k_e1, (2, n_edges1), 0, n1, jnp.int32)
    counts1, invd1 = build_graph_operands(e1, n1)

    out1 = jax.block_until_ready(gsgnet_forward(counts1, invd1, x1, params, mode="fused"))
    assert out1.shape == (n1, 24)
    ref1_bf = reference_forward_fused_precision(counts1, invd1, x1, params)
    assert jnp.allclose(out1, ref1_bf, atol=5e-2, rtol=5e-2), (
        float(jnp.max(jnp.abs(out1 - ref1_bf))))
    ref1_f32 = reference_forward_f32(counts1, invd1, x1, params)
    assert jnp.allclose(out1, ref1_f32, atol=0.3, rtol=0.3), (
        float(jnp.max(jnp.abs(out1 - ref1_f32))))

    # ---- larger graph: row-tiled two-call path (exercises the gridded kernels) ----
    n2, n_edges2 = 256, 1024
    x2 = jax.random.normal(k_x2, (n2, in_feats), jnp.float32)
    e2 = jax.random.randint(k_e2, (2, n_edges2), 0, n2, jnp.int32)
    counts2, invd2 = build_graph_operands(e2, n2)

    out2 = jax.block_until_ready(
        gsgnet_forward(counts2, invd2, x2, params, mode="tiled", row_tile=128))
    assert out2.shape == (n2, 24)
    ref2_bf = reference_forward_tiled_precision(counts2, invd2, x2, params)
    assert jnp.allclose(out2, ref2_bf, atol=5e-2, rtol=5e-2), (
        float(jnp.max(jnp.abs(out2 - ref2_bf))))
    ref2_f32 = reference_forward_f32(counts2, invd2, x2, params)
    assert jnp.allclose(out2, ref2_f32, atol=0.3, rtol=0.3), (
        float(jnp.max(jnp.abs(out2 - ref2_f32))))

    print("KERNEL_OK")
</pallas_src>

<mosaic_0001>
module attributes {stable_mosaic.version = 11 : i64} {
  func.func @_gsgnet_fused_kernel(%arg0: memref<64x64xbf16, #tpu.memory_space<vmem>>, %arg1: memref<64x1xf32, #tpu.memory_space<vmem>>, %arg2: memref<64x32xbf16, #tpu.memory_space<vmem>>, %arg3: memref<32x256xbf16, #tpu.memory_space<vmem>>, %arg4: memref<128x256xbf16, #tpu.memory_space<vmem>>, %arg5: memref<2x128xf32, #tpu.memory_space<vmem>>, %arg6: memref<64x128xf32, #tpu.memory_space<vmem>>) attributes {dimension_semantics = [], scalar_prefetch = 0 : i64, scratch_operands = 0 : i64, tpu.core_type = #tpu.core_type<tc>} {
    %c0 = arith.constant 0 : index
    %c0_0 = arith.constant 0 : index
    %0 = vector.load %arg0[%c0, %c0_0] : memref<64x64xbf16, #tpu.memory_space<vmem>>, vector<64x64xbf16>
    %c0_1 = arith.constant 0 : index
    %c0_2 = arith.constant 0 : index
    %1 = vector.load %arg1[%c0_1, %c0_2] : memref<64x1xf32, #tpu.memory_space<vmem>>, vector<64x1xf32>
    %c0_3 = arith.constant 0 : index
    %c0_4 = arith.constant 0 : index
    %2 = vector.load %arg2[%c0_3, %c0_4] : memref<64x32xbf16, #tpu.memory_space<vmem>>, vector<64x32xbf16>
    %c0_5 = arith.constant 0 : index
    %c0_6 = arith.constant 0 : index
    %3 = vector.load %arg3[%c0_5, %c0_6] : memref<32x256xbf16, #tpu.memory_space<vmem>>, vector<32x256xbf16>
    %c0_7 = arith.constant 0 : index
    %c0_8 = arith.constant 0 : index
    %4 = vector.load %arg4[%c0_7, %c0_8] : memref<128x256xbf16, #tpu.memory_space<vmem>>, vector<128x256xbf16>
    %c0_9 = arith.constant 0 : index
    %c0_10 = arith.constant 0 : index
    %5 = vector.load %arg5[%c0_9, %c0_10] : memref<2x128xf32, #tpu.memory_space<vmem>>, vector<1x128xf32>
    %c1 = arith.constant 1 : index
    %c0_11 = arith.constant 0 : index
    %6 = vector.load %arg5[%c1, %c0_11] : memref<2x128xf32, #tpu.memory_space<vmem>>, vector<1x128xf32>
    %cst = arith.constant dense<0.000000e+00> : vector<64x256xf32>
    %7 = tpu.matmul %2, %3, %cst {dimension_numbers = #tpu.dot_dimension_numbers<[1], [0], [0], [1], [0, 0, 1, 1], [], []>} : vector<64x32xbf16>, vector<32x256xbf16>, vector<64x256xf32> -> vector<64x256xf32>
    %8 = vector.extract_strided_slice %7 {offsets = [0, 0], sizes = [64, 128], strides = [1, 1]} : vector<64x256xf32> to vector<64x128xf32>
    %9 = arith.truncf %8 : vector<64x128xf32> to vector<64x128xbf16>
    %cst_12 = arith.constant dense<0.000000e+00> : vector<64x128xf32>
    %10 = tpu.matmul %0, %9, %cst_12 {dimension_numbers = #tpu.dot_dimension_numbers<[1], [0], [0], [1], [0, 0, 1, 1], [], []>} : vector<64x64xbf16>, vector<64x128xbf16>, vector<64x128xf32> -> vector<64x128xf32>
    %11 = vector.broadcast %1 : vector<64x1xf32> to vector<64x128xf32>
    %12 = arith.mulf %11, %10 : vector<64x128xf32>
    %13 = vector.extract_strided_slice %7 {offsets = [0, 128], sizes = [64, 128], strides = [1, 1]} : vector<64x256xf32> to vector<64x128xf32>
    %14 = arith.addf %12, %13 : vector<64x128xf32>
    %15 = vector.broadcast %5 : vector<1x128xf32> to vector<64x128xf32>
    %16 = arith.addf %14, %15 : vector<64x128xf32>
    %cst_13 = arith.constant 0.000000e+00 : f32
    %17 = vector.broadcast %cst_13 : f32 to vector<64x128xf32>
    %18 = arith.maximumf %16, %17 : vector<64x128xf32>
    %19 = arith.truncf %18 : vector<64x128xf32> to vector<64x128xbf16>
    %cst_14 = arith.constant dense<0.000000e+00> : vector<64x256xf32>
    %20 = tpu.matmul %19, %4, %cst_14 {dimension_numbers = #tpu.dot_dimension_numbers<[1], [0], [0], [1], [0, 0, 1, 1], [], []>} : vector<64x128xbf16>, vector<128x256xbf16>, vector<64x256xf32> -> vector<64x256xf32>
    %21 = vector.extract_strided_slice %20 {offsets = [0, 0], sizes = [64, 128], strides = [1, 1]} : vector<64x256xf32> to vector<64x128xf32>
    %22 = arith.truncf %21 : vector<64x128xf32> to vector<64x128xbf16>
    %cst_15 = arith.constant dense<0.000000e+00> : vector<64x128xf32>
    %23 = tpu.matmul %0, %22, %cst_15 {dimension_numbers = #tpu.dot_dimension_numbers<[1], [0], [0], [1], [0, 0, 1, 1], [], []>} : vector<64x64xbf16>, vector<64x128xbf16>, vector<64x128xf32> -> vector<64x128xf32>
    %24 = vector.broadcast %1 : vector<64x1xf32> to vector<64x128xf32>
    %25 = arith.mulf %24, %23 : vector<64x128xf32>
    %26 = vector.extract_strided_slice %20 {offsets = [0, 128], sizes = [64, 128], strides = [1, 1]} : vector<64x256xf32> to vector<64x128xf32>
    %27 = arith.addf %25, %26 : vector<64x128xf32>
    %28 = vector.broadcast %6 : vector<1x128xf32> to vector<64x128xf32>
    %29 = arith.addf %27, %28 : vector<64x128xf32>
    %30 = tpu.iota {dimensions = array<i32: 1>} : vector<64x128xi32>
    %c24_i32 = arith.constant 24 : i32
    %31 = vector.broadcast %c24_i32 : i32 to vector<64x128xi32>
    %32 = arith.cmpi slt, %30, %31 : vector<64x128xi32>
    %cst_16 = arith.constant -1.000000e+30 : f32
    %33 = vector.broadcast %cst_16 : f32 to vector<64x128xf32>
    %34 = arith.select %32, %29, %33 : vector<64x128xi1>, vector<64x128xf32>
    %cst_17 = arith.constant dense<0xFF800000> : vector<64xf32>
    %35 = vector.multi_reduction <maximumf>, %34, %cst_17 [1] : vector<64x128xf32> to vector<64xf32>
    %36 = vector.shape_cast %35 : vector<64xf32> to vector<64x1xf32>
    %37 = vector.broadcast %36 : vector<64x1xf32> to vector<64x128xf32>
    %38 = arith.subf %29, %37 : vector<64x128xf32>
    %39 = math.exp %38 : vector<64x128xf32>
    %cst_18 = arith.constant 0.000000e+00 : f32
    %40 = vector.broadcast %cst_18 : f32 to vector<64x128xf32>
    %41 = arith.select %32, %39, %40 : vector<64x128xi1>, vector<64x128xf32>
    %cst_19 = arith.constant dense<0.000000e+00> : vector<64xf32>
    %42 = vector.multi_reduction <add>, %41, %cst_19 [1] : vector<64x128xf32> to vector<64xf32>
    %43 = vector.shape_cast %42 : vector<64xf32> to vector<64x1xf32>
    %44 = math.log %43 : vector<64x1xf32>
    %45 = vector.broadcast %44 : vector<64x1xf32> to vector<64x128xf32>
    %46 = arith.subf %38, %45 : vector<64x128xf32>
    %cst_20 = arith.constant -1.000000e+30 : f32
    %47 = vector.broadcast %cst_20 : f32 to vector<64x128xf32>
    %48 = arith.select %32, %46, %47 : vector<64x128xi1>, vector<64x128xf32>
    %c0_21 = arith.constant 0 : index
    %c0_22 = arith.constant 0 : index
    %49 = vector.load %arg6[%c0_21, %c0_22] : memref<64x128xf32, #tpu.memory_space<vmem>>, vector<64x128xf32>
    tpu.vector_store %arg6[%c0_21, %c0_22], %48 {strides = array<i32>} : memref<64x128xf32, #tpu.memory_space<vmem>>, vector<64x128xf32>,
    return
  }
}

</mosaic_0001>

<llo_original>
// kernel: tpu_custom_call.1
$region0: #{tpu_custom_call.1}
  #allocation0 [shape = 'u32[]', space=smem, size = 0x4, offset = 0x4, fixed_abs, tag = 'smem constant byte address 0x4 - core index']
  #allocation1 [shape = 'u32[144,128]{1,0:T(1,128)}', space=vmem, size = 0x12000, scoped, tag = 'internal scratch']
  %s0 = inlined_call_operand.vmem [shape: bf16[64,64], index: 0, kind: input, shape index: {}]
  %s1 = inlined_call_operand.vmem [shape: f32[64,1], index: 1, kind: input, shape index: {}]
  %s2 = inlined_call_operand.vmem [shape: bf16[64,32], index: 2, kind: input, shape index: {}]
  %s3 = inlined_call_operand.vmem [shape: bf16[32,256], index: 3, kind: input, shape index: {}]
  %s4 = inlined_call_operand.hbm [shape: bf16[128,256], index: 4, kind: input, shape index: {}]
  %s5 = inlined_call_operand.vmem [shape: f32[2,128], index: 5, kind: input, shape index: {}]
  %s6 = inlined_call_operand.hbm [shape: f32[64,128], index: 6, kind: output, shape index: {}]
  %s7 = sld [smem:[#allocation0]]
  $region38: #{tpu_custom_call.1} parent=0
    _
  %s9 = ssub.s32 1, %s7
  %s10 = scalar_select 0, %s9, %s7
  $region1: #{tpu_custom_call.1} parent=0
    #allocation2 [shape = 'u8[65536]{0}', space=vmem, size = 0x10000, scoped, tag = 'input window, operand 4, single buffered']
    #allocation3 [shape = 's32[1]{0}', space=sflag, size = 0x4, scoped, tag = 'scoped memory for tpu_custom_call.1']
    #allocation4 [shape = 's32[1]{0}', space=sflag, size = 0x4, scoped, tag = 'scoped memory for tpu_custom_call.1']
    #allocation5 [shape = 'u8[32768]{0}', space=vmem, size = 0x8000, scoped, tag = 'output window, operand 0, single buffered']
    %11 = vsyncpa [#allocation3], 0
    %12 = vsyncpa [#allocation4], 0
    // Predicated region
    $region2: #{tpu_custom_call.1} parent=1 // pred_check
      _
    $region3: #{tpu_custom_call.1} parent=1 // pred_check_branch
      %14 = sbr.rel (0) target = $region5
    $region4: #{tpu_custom_call.1} parent=1 // pred_region
      _
    $region5: #{tpu_custom_call.1} parent=1 // pred_fallthru
      _
    // Predicated region
    $region6: #{tpu_custom_call.1} parent=1 // pred_check
      _
    $region7: #{tpu_custom_call.1} parent=1 // pred_check_branch
      %16 = sbr.rel (0) target = $region9
    $region8: #{tpu_custom_call.1} parent=1 // pred_region
      _
    $region9: #{tpu_custom_call.1} parent=1 // pred_fallthru
      _
    // Predicated region
    $region10: #{tpu_custom_call.1} parent=1 // pred_check
      _
    $region11: #{tpu_custom_call.1} parent=1 // pred_check_branch
      %18 = sbr.rel (0) target = $region13
    $region12: #{tpu_custom_call.1} parent=1 // pred_region
      _
    $region13: #{tpu_custom_call.1} parent=1 // pred_fallthru
      _
    // Predicated region
    $region14: #{tpu_custom_call.1} parent=1 // pred_check
      _
    $region15: #{tpu_custom_call.1} parent=1 // pred_check_branch
      %20 = sbr.rel (0) target = $region17
    $region16: #{tpu_custom_call.1} parent=1 // pred_region
      _
    $region17: #{tpu_custom_call.1} parent=1 // pred_fallthru
      _
    // Predicated region
    $region18: #{tpu_custom_call.1} parent=1 // pred_check
      _
    $region19: #{tpu_custom_call.1} parent=1 // pred_check_branch
      %22 = sbr.rel (0) target = $region21
    $region20: #{tpu_custom_call.1} parent=1 // pred_region
      %s24 = ssub.s32 2048, 2048
      %25 = vsyncadd [#allocation3], %s24
      %s26 = sshll.u32 [#allocation2], 4
      %s27 = int_to_ptr.vmem [resolvable:$true] %s26
      %32 = dma.hbm_to_vmem [thread:$0]  %s4, 2048, %s27, [#allocation3], 128, 128, 8
    $region21: #{tpu_custom_call.1} parent=1 // pred_fallthru
      _
    // Predicated region
    $region22: #{tpu_custom_call.1} parent=1 // pred_check
      _
    $region23: #{tpu_custom_call.1} parent=1 // pred_check_branch
      %34 = sbr.rel (0) target = $region25
    $region24: #{tpu_custom_call.1} parent=1 // pred_region
      _
    $region25: #{tpu_custom_call.1} parent=1 // pred_fallthru
      _
    // Predicated region
    $region26: #{tpu_custom_call.1} parent=1 // pred_check
      _
    $region27: #{tpu_custom_call.1} parent=1 // pred_check_branch
      %36 = sbr.rel (0) target = $region29
    $region28: #{tpu_custom_call.1} parent=1 // pred_region
      %37 = dma.done [#allocation3], 2048
    $region29: #{tpu_custom_call.1} parent=1 // pred_fallthru
      _
    %v39 = vld [vmem:[%s0] sm:$0xf]
    %v40 = vld [vmem:[%s0 + $0x4] sm:$0xf]
    %v41 = vld [vmem:[%s0 + $0x8] sm:$0xf]
    %v42 = vld [vmem:[%s0 + $0xc] sm:$0xf]
    %v43 = vld [vmem:[%s0 + $0x10] sm:$0xf]
    %v44 = vld [vmem:[%s0 + $0x14] sm:$0xf]
    %v45 = vld [vmem:[%s0 + $0x18] sm:$0xf]
    %v46 = vld [vmem:[%s0 + $0x1c] sm:$0xf]
    %v47 = vld [vmem:[%s1] sm:$0xff]
    %v48 = vld [vmem:[%s1 + $0x8] sm:$0xff]
    %v49 = vld [vmem:[%s1 + $0x10] sm:$0xff]
    %v50 = vld [vmem:[%s1 + $0x18] sm:$0xff]
    %v51 = vld [vmem:[%s1 + $0x20] sm:$0xff]
    %v52 = vld [vmem:[%s1 + $0x28] sm:$0xff]
    %v53 = vld [vmem:[%s1 + $0x30] sm:$0xff]
    %v54 = vld [vmem:[%s1 + $0x38] sm:$0xff]
    %v55 = vld [vmem:[%s2] sm:$0xf]
    %v56 = vld [vmem:[%s2 + $0x4] sm:$0xf]
    %v57 = vld [vmem:[%s2 + $0x8] sm:$0xf]
    %v58 = vld [vmem:[%s2 + $0xc] sm:$0xf]
    %v59 = vld [vmem:[%s2 + $0x10] sm:$0xf]
    %v60 = vld [vmem:[%s2 + $0x14] sm:$0xf]
    %v61 = vld [vmem:[%s2 + $0x18] sm:$0xf]
    %v62 = vld [vmem:[%s2 + $0x1c] sm:$0xf]
    %v63 = vld [vmem:[%s3] sm:$0xff]
    %v64 = vld [vmem:[%s3 + $0x8] sm:$0xff]
    %v65 = vld [vmem:[%s3 + $0x10] sm:$0xff]
    %v66 = vld [vmem:[%s3 + $0x18] sm:$0xff]
    %v67 = vld [vmem:[#allocation2] sm:$0xff]
    %v68 = vld [vmem:[#allocation2 + $0x8] sm:$0xff]
    %v69 = vld [vmem:[#allocation2 + $0x10] sm:$0xff]
    %v70 = vld [vmem:[#allocation2 + $0x18] sm:$0xff]
    %v71 = vld [vmem:[#allocation2 + $0x20] sm:$0xff]
    %v72 = vld [vmem:[#allocation2 + $0x28] sm:$0xff]
    %v73 = vld [vmem:[#allocation2 + $0x30] sm:$0xff]
    %v74 = vld [vmem:[#allocation2 + $0x38] sm:$0xff]
    %v75 = vld [vmem:[#allocation2 + $0x40] sm:$0xff]
    %v76 = vld [vmem:[#allocation2 + $0x48] sm:$0xff]
    %v77 = vld [vmem:[#allocation2 + $0x50] sm:$0xff]
    %v78 = vld [vmem:[#allocation2 + $0x58] sm:$0xff]
    %v79 = vld [vmem:[#allocation2 + $0x60] sm:$0xff]
    %v80 = vld [vmem:[#allocation2 + $0x68] sm:$0xff]
    %v81 = vld [vmem:[#allocation2 + $0x70] sm:$0xff]
    %v82 = vld [vmem:[#allocation2 + $0x78] sm:$0xff]
    %v83 = vld [vmem:[%s5] sm:$0x1]
    %v84 = vld [vmem:[%s5 + $0x1] sm:$0x1]
    %v93 = vunpack.c.l.b16 %v55
    %v94 = vunpack.c.l.b16 %v56
    %v95 = vunpack.c.l.b16 %v57
    %v96 = vunpack.c.l.b16 %v58
    %v97 = vunpack.c.l.b16 %v59
    %v98 = vunpack.c.l.b16 %v60
    %v99 = vunpack.c.l.b16 %v61
    %v100 = vunpack.c.l.b16 %v62
    %v101 = vpack.c.b16 %v94, %v93
    %v102 = vpack.c.b16 %v96, %v95
    %v103 = vpack.c.b16 %v98, %v97
    %v104 = vpack.c.b16 %v100, %v99
    %v109 = vunpack.c.l.b16 %v63
    %v110 = vunpack.c.h.b16 %v63
    %v111 = vunpack.c.l.b16 %v64
    %v112 = vunpack.c.h.b16 %v64
    %v113 = vunpack.c.l.b16 %v65
    %v114 = vunpack.c.h.b16 %v65
    %v115 = vunpack.c.l.b16 %v66
    %v116 = vunpack.c.h.b16 %v66
    %v117 = vpack.c.b16 %v111, %v109
    %v118 = vpack.c.b16 %v112, %v110
    %v119 = vpack.c.b16 %v115, %v113
    %v120 = vpack.c.b16 %v116, %v114
    %vm125 = vcmask 261120
    %v127 = vsel %vm125, %v101, 0
    %v130 = vsel %vm125, %v102, 0
    %v133 = vsel %vm125, %v103, 0
    %v136 = vsel %vm125, %v104, 0
    %138 = vmatprep.subr.bf16.mxu0 0
    %139 = vmatpush1.bf16.msra.mxu0 0
    %140 = vmatprep.subr.bf16.mxu0 0
    %141 = vmatpush1.bf16.msra.mxu0 0
    %142 = vmatprep.subr.bf16.mxu0 0
    %143 = vmatpush1.bf16.msra.mxu0 0
    %144 = vmatprep.subr.bf16.mxu0 0
    %145 = vmatpush1.bf16.msra.mxu0 0
    %146 = vmatprep.subr.bf16.mxu0 0
    %147 = vmatpush1.bf16.msra.mxu0 0
    %148 = vmatprep.subr.bf16.mxu0 0
    %149 = vmatpush1.bf16.msra.mxu0 0
    %150 = vmatprep.subr.bf16.mxu0 %v120
    %151 = vmatpush1.bf16.msra.mxu0 %v119
    %152 = vmatprep.subr.bf16.mxu0 %v118
    %153 = vmatpush1.bf16.msra.mxu0 %v117
    %154 = vmatprep.subr.bf16.mxu0 0
    %155 = vmatpush2.bf16.msra.mxu0 0
    %156 = vmatprep.subr.bf16.mxu0 0
    %157 = vmatpush2.bf16.msra.mxu0 0
    %158 = vmatprep.subr.bf16.mxu0 0
    %159 = vmatpush2.bf16.msra.mxu0 0
    %160 = vmatprep.subr.bf16.mxu0 0
    %161 = vmatpush2.bf16.msra.mxu0 0
    %162 = vmatprep.subr.bf16.mxu0 0
    %163 = vmatpush2.bf16.msra.mxu0 0
    %164 = vmatprep.subr.bf16.mxu0 0
    %165 = vmatpush2.bf16.msra.mxu0 0
    %166 = vmatprep.subr.bf16.mxu0 0
    %167 = vmatpush2.bf16.msra.mxu0 0
    %168 = vmatprep.subr.bf16.mxu0 0
    %169 = vmatpush2.bf16.msra.mxu0 0
    %170 = vmatprep.mubr.bf16.mxu0 0
    %171 = vmatmul.mubr.bf16.gmra.mxu0 %v127
    %v172 = vpop.f32.mrf.mxu0
    %v173 = vadd.f32 0.0, %v172
    %v174 = vpop.f32.mrf.mxu0
    %v175 = vadd.f32 0.0, %v174
    %v176 = vpop.f32.mrf.mxu0
    %v177 = vadd.f32 0.0, %v176
    %v178 = vpop.f32.mrf.mxu0
    %v179 = vadd.f32 0.0, %v178
    %180 = vmatprep.mubr.bf16.mxu0 0
    %181 = vmatmul.mubr.bf16.gmra.mxu0 %v130
    %v182 = vpop.f32.mrf.mxu0
    %v183 = vadd.f32 0.0, %v182
    %v184 = vpop.f32.mrf.mxu0
    %v185 = vadd.f32 0.0, %v184
    %v186 = vpop.f32.mrf.mxu0
    %v187 = vadd.f32 0.0, %v186
    %v188 = vpop.f32.mrf.mxu0
    %v189 = vadd.f32 0.0, %v188
    %190 = vmatprep.mubr.bf16.mxu0 0
    %191 = vmatmul.mubr.bf16.gmra.mxu0 %v133
    %v192 = vpop.f32.mrf.mxu0
    %v193 = vadd.f32 0.0, %v192
    %v194 = vpop.f32.mrf.mxu0
    %v195 = vadd.f32 0.0, %v194
    %v196 = vpop.f32.mrf.mxu0
    %v197 = vadd.f32 0.0, %v196
    %v198 = vpop.f32.mrf.mxu0
    %v199 = vadd.f32 0.0, %v198
    %200 = vmatprep.mubr.bf16.mxu0 0
    %201 = vmatmul.mubr.bf16.gmra.mxu0 %v136
    %v202 = vpop.f32.mrf.mxu0
    %v203 = vadd.f32 0.0, %v202
    %v204 = vpop.f32.mrf.mxu0
    %v205 = vadd.f32 0.0, %v204
    %v206 = vpop.f32.mrf.mxu0
    %v207 = vadd.f32 0.0, %v206
    %v208 = vpop.f32.mrf.mxu0
    %v209 = vadd.f32 0.0, %v208
    %210 = vdwg.mxu0
    %v211 = vpack.c.bf16 %v177, %v173
    %v212 = vpack.c.bf16 %v187, %v183
    %v213 = vpack.c.bf16 %v197, %v193
    %v214 = vpack.c.bf16 %v207, %v203
    %v223 = vunpack.c.l.b16 %v39
    %v224 = vunpack.c.l.b16 %v40
    %v225 = vunpack.c.l.b16 %v41
    %v226 = vunpack.c.l.b16 %v42
    %v227 = vunpack.c.l.b16 %v43
    %v228 = vunpack.c.l.b16 %v44
    %v229 = vunpack.c.l.b16 %v45
    %v230 = vunpack.c.l.b16 %v46
    %v231 = vpack.c.b16 %v224, %v223
    %v232 = vpack.c.b16 %v226, %v225
    %v233 = vpack.c.b16 %v228, %v227
    %v234 = vpack.c.b16 %v230, %v229
    %vm235 = vcmask 523264
    %v237 = vsel %vm235, %v231, 0
    %v240 = vsel %vm235, %v232, 0
    %v243 = vsel %vm235, %v233, 0
    %v246 = vsel %vm235, %v234, 0
    %248 = vmatprep.subr.bf16.mxu0 0
    %249 = vmatpush1.bf16.msra.mxu0 0
    %250 = vmatprep.subr.bf16.mxu0 0
    %251 = vmatpush1.bf16.msra.mxu0 0
    %252 = vmatprep.subr.bf16.mxu0 0
    %253 = vmatpush1.bf16.msra.mxu0 0
    %254 = vmatprep.subr.bf16.mxu0 0
    %255 = vmatpush1.bf16.msra.mxu0 0
    %256 = vmatprep.subr.bf16.mxu0 0
    %257 = vmatpush1.bf16.msra.mxu0 %v214
    %258 = vmatprep.subr.bf16.mxu0 0
    %259 = vmatpush1.bf16.msra.mxu0 %v213
    %260 = vmatprep.subr.bf16.mxu0 0
    %261 = vmatpush1.bf16.msra.mxu0 %v212
    %262 = vmatprep.subr.bf16.mxu0 0
    %263 = vmatpush1.bf16.msra.mxu0 %v211
    %264 = vmatprep.subr.bf16.mxu0 0
    %265 = vmatpush2.bf16.msra.mxu0 0
    %266 = vmatprep.subr.bf16.mxu0 0
    %267 = vmatpush2.bf16.msra.mxu0 0
    %268 = vmatprep.subr.bf16.mxu0 0
    %269 = vmatpush2.bf16.msra.mxu0 0
    %270 = vmatprep.subr.bf16.mxu0 0
    %271 = vmatpush2.bf16.msra.mxu0 0
    %272 = vmatprep.subr.bf16.mxu0 0
    %273 = vmatpush2.bf16.msra.mxu0 0
    %274 = vmatprep.subr.bf16.mxu0 0
    %275 = vmatpush2.bf16.msra.mxu0 0
    %276 = vmatprep.subr.bf16.mxu0 0
    %277 = vmatpush2.bf16.msra.mxu0 0
    %278 = vmatprep.subr.bf16.mxu0 0
    %279 = vmatpush2.bf16.msra.mxu0 0
    %280 = vmatprep.mubr.bf16.mxu0 0
    %281 = vmatmul.mubr.bf16.gmra.mxu0 %v237
    %v282 = vpop.f32.mrf.mxu0
    %v283 = vadd.f32 0.0, %v282
    %v284 = vpop.f32.mrf.mxu0
    %v285 = vpop.f32.mrf.mxu0
    %v286 = vadd.f32 0.0, %v285
    %v287 = vpop.f32.mrf.mxu0
    %288 = vmatprep.mubr.bf16.mxu0 0
    %289 = vmatmul.mubr.bf16.gmra.mxu0 %v240
    %v290 = vpop.f32.mrf.mxu0
    %v291 = vadd.f32 0.0, %v290
    %v292 = vpop.f32.mrf.mxu0
    %v293 = vpop.f32.mrf.mxu0
    %v294 = vadd.f32 0.0, %v293
    %v295 = vpop.f32.mrf.mxu0
    %296 = vmatprep.mubr.bf16.mxu0 0
    %297 = vmatmul.mubr.bf16.gmra.mxu0 %v243
    %v298 = vpop.f32.mrf.mxu0
    %v299 = vadd.f32 0.0, %v298
    %v300 = vpop.f32.mrf.mxu0
    %v301 = vpop.f32.mrf.mxu0
    %v302 = vadd.f32 0.0, %v301
    %v303 = vpop.f32.mrf.mxu0
    %304 = vmatprep.mubr.bf16.mxu0 0
    %305 = vmatmul.mubr.bf16.gmra.mxu0 %v246
    %v306 = vpop.f32.mrf.mxu0
    %v307 = vadd.f32 0.0, %v306
    %v308 = vpop.f32.mrf.mxu0
    %v309 = vpop.f32.mrf.mxu0
    %v310 = vadd.f32 0.0, %v309
    %v311 = vpop.f32.mrf.mxu0
    %312 = vdwg.mxu0
    %314 = vset.pattern.permute.xlu0 0
    %315 = vperm.xlu0 %314, %v47
    %v316 = vpop.permute.xlu0 %315
    %319 = vset.pattern.permute.xlu0 0
    %320 = vperm.xlu0 %319, %v48
    %v321 = vpop.permute.xlu0 %320
    %324 = vset.pattern.permute.xlu0 0
    %325 = vperm.xlu0 %324, %v49
    %v326 = vpop.permute.xlu0 %325
    %329 = vset.pattern.permute.xlu0 0
    %330 = vperm.xlu0 %329, %v50
    %v331 = vpop.permute.xlu0 %330
    %334 = vset.pattern.permute.xlu0 0
    %335 = vperm.xlu0 %334, %v51
    %v336 = vpop.permute.xlu0 %335
    %339 = vset.pattern.permute.xlu0 0
    %340 = vperm.xlu0 %339, %v52
    %v341 = vpop.permute.xlu0 %340
    %344 = vset.pattern.permute.xlu0 0
    %345 = vperm.xlu0 %344, %v53
    %v346 = vpop.permute.xlu0 %345
    %349 = vset.pattern.permute.xlu0 0
    %350 = vperm.xlu0 %349, %v54
    %v351 = vpop.permute.xlu0 %350
    %v353 = vmul.f32 %v316, %v283
    %v354 = vmul.f32 %v321, %v286
    %v355 = vmul.f32 %v326, %v291
    %v356 = vmul.f32 %v331, %v294
    %v357 = vmul.f32 %v336, %v299
    %v358 = vmul.f32 %v341, %v302
    %v359 = vmul.f32 %v346, %v307
    %v360 = vmul.f32 %v351, %v310
    %v361 = vadd.f32 %v353, %v175
    %v362 = vadd.f32 %v354, %v179
    %v363 = vadd.f32 %v355, %v185
    %v364 = vadd.f32 %v356, %v189
    %v365 = vadd.f32 %v357, %v195
    %v366 = vadd.f32 %v358, %v199
    %v367 = vadd.f32 %v359, %v205
    %v368 = vadd.f32 %v360, %v209
    %v369 = vlaneseq
    %v370 = vshrl.u32 %v369, 7
    %v371 = vsub.s32 0, %v370
    %v372 = vrot.slane %v83, %v371
    %v373 = vadd.f32 %v361, %v372
    %v374 = vadd.f32 %v362, %v372
    %v375 = vadd.f32 %v363, %v372
    %v376 = vadd.f32 %v364, %v372
    %v377 = vadd.f32 %v365, %v372
    %v378 = vadd.f32 %v366, %v372
    %v379 = vadd.f32 %v367, %v372
    %v380 = vadd.f32 %v368, %v372
    %v381 = vmax.f32 %v373, 0.0
    %v382 = vmax.f32 %v374, 0.0
    %v383 = vmax.f32 %v375, 0.0
    %v384 = vmax.f32 %v376, 0.0
    %v385 = vmax.f32 %v377, 0.0
    %v386 = vmax.f32 %v378, 0.0
    %v387 = vmax.f32 %v379, 0.0
    %v388 = vmax.f32 %v380, 0.0
    %v389 = vpack.c.bf16 %v382, %v381
    %v390 = vpack.c.bf16 %v384, %v383
    %v391 = vpack.c.bf16 %v386, %v385
    %v392 = vpack.c.bf16 %v388, %v387
    %v409 = vunpack.c.l.b16 %v67
    %v410 = vunpack.c.h.b16 %v67
    %v411 = vunpack.c.l.b16 %v68
    %v412 = vunpack.c.h.b16 %v68
    %v413 = vunpack.c.l.b16 %v69
    %v414 = vunpack.c.h.b16 %v69
    %v415 = vunpack.c.l.b16 %v70
    %v416 = vunpack.c.h.b16 %v70
    %v417 = vunpack.c.l.b16 %v71
    %v418 = vunpack.c.h.b16 %v71
    %v419 = vunpack.c.l.b16 %v72
    %v420 = vunpack.c.h.b16 %v72
    %v421 = vunpack.c.l.b16 %v73
    %v422 = vunpack.c.h.b16 %v73
    %v423 = vunpack.c.l.b16 %v74
    %v424 = vunpack.c.h.b16 %v74
    %v425 = vunpack.c.l.b16 %v75
    %v426 = vunpack.c.h.b16 %v75
    %v427 = vunpack.c.l.b16 %v76
    %v428 = vunpack.c.h.b16 %v76
    %v429 = vunpack.c.l.b16 %v77
    %v430 = vunpack.c.h.b16 %v77
    %v431 = vunpack.c.l.b16 %v78
    %v432 = vunpack.c.h.b16 %v78
    %v433 = vunpack.c.l.b16 %v79
    %v434 = vunpack.c.h.b16 %v79
    %v435 = vunpack.c.l.b16 %v80
    %v436 = vunpack.c.h.b16 %v80
    %v437 = vunpack.c.l.b16 %v81
    %v438 = vunpack.c.h.b16 %v81
    %v439 = vunpack.c.l.b16 %v82
    %v440 = vunpack.c.h.b16 %v82
    %v441 = vpack.c.b16 %v411, %v409
    %v442 = vpack.c.b16 %v412, %v410
    %v443 = vpack.c.b16 %v415, %v413
    %v444 = vpack.c.b16 %v416, %v414
    %v445 = vpack.c.b16 %v419, %v417
    %v446 = vpack.c.b16 %v420, %v418
    %v447 = vpack.c.b16 %v423, %v421
    %v448 = vpack.c.b16 %v424, %v422
    %v449 = vpack.c.b16 %v427, %v425
    %v450 = vpack.c.b16 %v428, %v426
    %v451 = vpack.c.b16 %v431, %v429
    %v452 = vpack.c.b16 %v432, %v430
    %v453 = vpack.c.b16 %v435, %v433
    %v454 = vpack.c.b16 %v436, %v434
    %v455 = vpack.c.b16 %v439, %v437
    %v456 = vpack.c.b16 %v440, %v438
    %473 = vmatprep.subr.bf16.mxu0 %v456
    %474 = vmatpush1.bf16.msra.mxu0 %v455
    %475 = vmatprep.subr.bf16.mxu0 %v454
    %476 = vmatpush1.bf16.msra.mxu0 %v453
    %477 = vmatprep.subr.bf16.mxu0 %v452
    %478 = vmatpush1.bf16.msra.mxu0 %v451
    %479 = vmatprep.subr.bf16.mxu0 %v450
    %480 = vmatpush1.bf16.msra.mxu0 %v449
    %481 = vmatprep.subr.bf16.mxu0 %v448
    %482 = vmatpush1.bf16.msra.mxu0 %v447
    %483 = vmatprep.subr.bf16.mxu0 %v446
    %484 = vmatpush1.bf16.msra.mxu0 %v445
    %485 = vmatprep.subr.bf16.mxu0 %v444
    %486 = vmatpush1.bf16.msra.mxu0 %v443
    %487 = vmatprep.subr.bf16.mxu0 %v442
    %488 = vmatpush1.bf16.msra.mxu0 %v441
    %489 = vmatprep.subr.bf16.mxu0 0
    %490 = vmatpush2.bf16.msra.mxu0 0
    %491 = vmatprep.subr.bf16.mxu0 0
    %492 = vmatpush2.bf16.msra.mxu0 0
    %493 = vmatprep.subr.bf16.mxu0 0
    %494 = vmatpush2.bf16.msra.mxu0 0
    %495 = vmatprep.subr.bf16.mxu0 0
    %496 = vmatpush2.bf16.msra.mxu0 0
    %497 = vmatprep.subr.bf16.mxu0 0
    %498 = vmatpush2.bf16.msra.mxu0 0
    %499 = vmatprep.subr.bf16.mxu0 0
    %500 = vmatpush2.bf16.msra.mxu0 0
    %501 = vmatprep.subr.bf16.mxu0 0
    %502 = vmatpush2.bf16.msra.mxu0 0
    %503 = vmatprep.subr.bf16.mxu0 0
    %504 = vmatpush2.bf16.msra.mxu0 0
    %505 = vmatprep.mubr.bf16.mxu0 0
    %506 = vmatmul.mubr.bf16.gmra.mxu0 %v389
    %v507 = vpop.f32.mrf.mxu0
    %v508 = vadd.f32 0.0, %v507
    %v509 = vpop.f32.mrf.mxu0
    %v510 = vadd.f32 0.0, %v509
    %v511 = vpop.f32.mrf.mxu0
    %v512 = vadd.f32 0.0, %v511
    %v513 = vpop.f32.mrf.mxu0
    %v514 = vadd.f32 0.0, %v513
    %515 = vmatprep.mubr.bf16.mxu0 0
    %516 = vmatmul.mubr.bf16.gmra.mxu0 %v390
    %v517 = vpop.f32.mrf.mxu0
    %v518 = vadd.f32 0.0, %v517
    %v519 = vpop.f32.mrf.mxu0
    %v520 = vadd.f32 0.0, %v519
    %v521 = vpop.f32.mrf.mxu0
    %v522 = vadd.f32 0.0, %v521
    %v523 = vpop.f32.mrf.mxu0
    %v524 = vadd.f32 0.0, %v523
    %525 = vmatprep.mubr.bf16.mxu0 0
    %526 = vmatmul.mubr.bf16.gmra.mxu0 %v391
    %v527 = vpop.f32.mrf.mxu0
    %v528 = vadd.f32 0.0, %v527
    %v529 = vpop.f32.mrf.mxu0
    %v530 = vadd.f32 0.0, %v529
    %v531 = vpop.f32.mrf.mxu0
    %v532 = vadd.f32 0.0, %v531
    %v533 = vpop.f32.mrf.mxu0
    %v534 = vadd.f32 0.0, %v533
    %535 = vmatprep.mubr.bf16.mxu0 0
    %536 = vmatmul.mubr.bf16.gmra.mxu0 %v392
    %v537 = vpop.f32.mrf.mxu0
    %v538 = vadd.f32 0.0, %v537
    %v539 = vpop.f32.mrf.mxu0
    %v540 = vadd.f32 0.0, %v539
    %v541 = vpop.f32.mrf.mxu0
    %v542 = vadd.f32 0.0, %v541
    %v543 = vpop.f32.mrf.mxu0
    %v544 = vadd.f32 0.0, %v543
    %545 = vdwg.mxu0
    %v546 = vpack.c.bf16 %v512, %v508
    %v547 = vpack.c.bf16 %v522, %v518
    %v548 = vpack.c.bf16 %v532, %v528
    %v549 = vpack.c.bf16 %v542, %v538
    %550 = vmatprep.subr.bf16.mxu0 0
    %551 = vmatpush1.bf16.msra.mxu0 0
    %552 = vmatprep.subr.bf16.mxu0 0
    %553 = vmatpush1.bf16.msra.mxu0 0
    %554 = vmatprep.subr.bf16.mxu0 0
    %555 = vmatpush1.bf16.msra.mxu0 0
    %556 = vmatprep.subr.bf16.mxu0 0
    %557 = vmatpush1.bf16.msra.mxu0 0
    %558 = vmatprep.subr.bf16.mxu0 0
    %559 = vmatpush1.bf16.msra.mxu0 %v549
    %560 = vmatprep.subr.bf16.mxu0 0
    %561 = vmatpush1.bf16.msra.mxu0 %v548
    %562 = vmatprep.subr.bf16.mxu0 0
    %563 = vmatpush1.bf16.msra.mxu0 %v547
    %564 = vmatprep.subr.bf16.mxu0 0
    %565 = vmatpush1.bf16.msra.mxu0 %v546
    %566 = vmatprep.subr.bf16.mxu0 0
    %567 = vmatpush2.bf16.msra.mxu0 0
    %568 = vmatprep.subr.bf16.mxu0 0
    %569 = vmatpush2.bf16.msra.mxu0 0
    %570 = vmatprep.subr.bf16.mxu0 0
    %571 = vmatpush2.bf16.msra.mxu0 0
    %572 = vmatprep.subr.bf16.mxu0 0
    %573 = vmatpush2.bf16.msra.mxu0 0
    %574 = vmatprep.subr.bf16.mxu0 0
    %575 = vmatpush2.bf16.msra.mxu0 0
    %576 = vmatprep.subr.bf16.mxu0 0
    %577 = vmatpush2.bf16.msra.mxu0 0
    %578 = vmatprep.subr.bf16.mxu0 0
    %579 = vmatpush2.bf16.msra.mxu0 0
    %580 = vmatprep.subr.bf16.mxu0 0
    %581 = vmatpush2.bf16.msra.mxu0 0
    %582 = vmatprep.mubr.bf16.mxu0 0
    %583 = vmatmul.mubr.bf16.gmra.mxu0 %v237
    %v584 = vpop.f32.mrf.mxu0
    %v585 = vadd.f32 0.0, %v584
    %v586 = vpop.f32.mrf.mxu0
    %v587 = vpop.f32.mrf.mxu0
    %v588 = vadd.f32 0.0, %v587
    %v589 = vpop.f32.mrf.mxu0
    %590 = vmatprep.mubr.bf16.mxu0 0
    %591 = vmatmul.mubr.bf16.gmra.mxu0 %v240
    %v592 = vpop.f32.mrf.mxu0
    %v593 = vadd.f32 0.0, %v592
    %v594 = vpop.f32.mrf.mxu0
    %v595 = vpop.f32.mrf.mxu0
    %v596 = vadd.f32 0.0, %v595
    %v597 = vpop.f32.mrf.mxu0
    %598 = vmatprep.mubr.bf16.mxu0 0
    %599 = vmatmul.mubr.bf16.gmra.mxu0 %v243
    %v600 = vpop.f32.mrf.mxu0
    %v601 = vadd.f32 0.0, %v600
    %v602 = vpop.f32.mrf.mxu0
    %v603 = vpop.f32.mrf.mxu0
    %v604 = vadd.f32 0.0, %v603
    %v605 = vpop.f32.mrf.mxu0
    %606 = vmatprep.mubr.bf16.mxu0 0
    %607 = vmatmul.mubr.bf16.gmra.mxu0 %v246
    %v608 = vpop.f32.mrf.mxu0
    %v609 = vadd.f32 0.0, %v608
    %v610 = vpop.f32.mrf.mxu0
    %v611 = vpop.f32.mrf.mxu0
    %v612 = vadd.f32 0.0, %v611
    %v613 = vpop.f32.mrf.mxu0
    %614 = vdwg.mxu0
    %v615 = vmul.f32 %v316, %v585
    %v616 = vmul.f32 %v321, %v588
    %v617 = vmul.f32 %v326, %v593
    %v618 = vmul.f32 %v331, %v596
    %v619 = vmul.f32 %v336, %v601
    %v620 = vmul.f32 %v341, %v604
    %v621 = vmul.f32 %v346, %v609
    %v622 = vmul.f32 %v351, %v612
    %v623 = vadd.f32 %v615, %v510
    %v624 = vadd.f32 %v616, %v514
    %v625 = vadd.f32 %v617, %v520
    %v626 = vadd.f32 %v618, %v524
    %v627 = vadd.f32 %v619, %v530
    %v628 = vadd.f32 %v620, %v534
    %v629 = vadd.f32 %v621, %v540
    %v630 = vadd.f32 %v622, %v544
    %v631 = vlaneseq
    %v632 = vshrl.u32 %v631, 7
    %v633 = vsub.s32 0, %v632
    %v634 = vrot.slane %v84, %v633
    %v635 = vadd.f32 %v623, %v634
    %v636 = vadd.f32 %v624, %v634
    %v637 = vadd.f32 %v625, %v634
    %v638 = vadd.f32 %v626, %v634
    %v639 = vadd.f32 %v627, %v634
    %v640 = vadd.f32 %v628, %v634
    %v641 = vadd.f32 %v629, %v634
    %v642 = vadd.f32 %v630, %v634
    %v643 = vlaneseq
    %v644 = vand.u32 %v643, 127
    %vm645 = vcmp.lt.s32.totalorder %v644, 24
    %v646 = vsel %vm645, %v635, -1e+30
    %v647 = vsel %vm645, %v636, -1e+30
    %v648 = vsel %vm645, %v637, -1e+30
    %v649 = vsel %vm645, %v638, -1e+30
    %v650 = vsel %vm645, %v639, -1e+30
    %v651 = vsel %vm645, %v640, -1e+30
    %v652 = vsel %vm645, %v641, -1e+30
    %v653 = vsel %vm645, %v642, -1e+30
    %654 = vmax.xlane.f32.xlu0 %v646
    %v655 = vpop.xlane.xlu0 %654
    %656 = vmax.xlane.f32.xlu0 %v647
    %v657 = vpop.xlane.xlu0 %656
    %658 = vmax.xlane.f32.xlu0 %v648
    %v659 = vpop.xlane.xlu0 %658
    %660 = vmax.xlane.f32.xlu0 %v649
    %v661 = vpop.xlane.xlu0 %660
    %662 = vmax.xlane.f32.xlu0 %v650
    %v663 = vpop.xlane.xlu0 %662
    %664 = vmax.xlane.f32.xlu0 %v651
    %v665 = vpop.xlane.xlu0 %664
    %666 = vmax.xlane.f32.xlu0 %v652
    %v667 = vpop.xlane.xlu0 %666
    %668 = vmax.xlane.f32.xlu0 %v653
    %v669 = vpop.xlane.xlu0 %668
    %v670 = vsub.f32 %v635, %v655
    %v671 = vsub.f32 %v636, %v657
    %v672 = vsub.f32 %v637, %v659
    %v673 = vsub.f32 %v638, %v661
    %v674 = vsub.f32 %v639, %v663
    %v675 = vsub.f32 %v640, %v665
    %v676 = vsub.f32 %v641, %v667
    %v677 = vsub.f32 %v642, %v669
    %v678 = vmul.f32 %v670, 1.442695
    %v679 = vpow.pop %v678
    %v680 = vmul.f32 %v671, 1.442695
    %v681 = vpow.pop %v680
    %v682 = vmul.f32 %v672, 1.442695
    %v683 = vpow.pop %v682
    %v684 = vmul.f32 %v673, 1.442695
    %v685 = vpow.pop %v684
    %v686 = vmul.f32 %v674, 1.442695
    %v687 = vpow.pop %v686
    %v688 = vmul.f32 %v675, 1.442695
    %v689 = vpow.pop %v688
    %v690 = vmul.f32 %v676, 1.442695
    %v691 = vpow.pop %v690
    %v692 = vmul.f32 %v677, 1.442695
    %v693 = vpow.pop %v692
    %v694 = vsel %vm645, %v679, 0.0
    %v695 = vsel %vm645, %v681, 0.0
    %v696 = vsel %vm645, %v683, 0.0
    %v697 = vsel %vm645, %v685, 0.0
    %v698 = vsel %vm645, %v687, 0.0
    %v699 = vsel %vm645, %v689, 0.0
    %v700 = vsel %vm645, %v691, 0.0
    %v701 = vsel %vm645, %v693, 0.0
    %702 = vadd.xlane.f32.xlu0 %v694
    %v703 = vpop.xlane.xlu0 %702
    %704 = vadd.xlane.f32.xlu0 %v695
    %v705 = vpop.xlane.xlu0 %704
    %706 = vadd.xlane.f32.xlu0 %v696
    %v707 = vpop.xlane.xlu0 %706
    %708 = vadd.xlane.f32.xlu0 %v697
    %v709 = vpop.xlane.xlu0 %708
    %710 = vadd.xlane.f32.xlu0 %v698
    %v711 = vpop.xlane.xlu0 %710
    %712 = vadd.xlane.f32.xlu0 %v699
    %v713 = vpop.xlane.xlu0 %712
    %714 = vadd.xlane.f32.xlu0 %v700
    %v715 = vpop.xlane.xlu0 %714
    %716 = vadd.xlane.f32.xlu0 %v701
    %v717 = vpop.xlane.xlu0 %716
    %v718 = vlog2.pop %v703
    %v719 = vmul.f32 %v718, 0.6931472
    %v720 = vlog2.pop %v705
    %v721 = vmul.f32 %v720, 0.6931472
    %v722 = vlog2.pop %v707
    %v723 = vmul.f32 %v722, 0.6931472
    %v724 = vlog2.pop %v709
    %v725 = vmul.f32 %v724, 0.6931472
    %v726 = vlog2.pop %v711
    %v727 = vmul.f32 %v726, 0.6931472
    %v728 = vlog2.pop %v713
    %v729 = vmul.f32 %v728, 0.6931472
    %v730 = vlog2.pop %v715
    %v731 = vmul.f32 %v730, 0.6931472
    %v732 = vlog2.pop %v717
    %v733 = vmul.f32 %v732, 0.6931472
    %v734 = vsub.f32 %v670, %v719
    %v735 = vsub.f32 %v671, %v721
    %v736 = vsub.f32 %v672, %v723
    %v737 = vsub.f32 %v673, %v725
    %v738 = vsub.f32 %v674, %v727
    %v739 = vsub.f32 %v675, %v729
    %v740 = vsub.f32 %v676, %v731
    %v741 = vsub.f32 %v677, %v733
    %v742 = vsel %vm645, %v734, -1e+30
    %v743 = vsel %vm645, %v735, -1e+30
    %v744 = vsel %vm645, %v736, -1e+30
    %v745 = vsel %vm645, %v737, -1e+30
    %v746 = vsel %vm645, %v738, -1e+30
    %v747 = vsel %vm645, %v739, -1e+30
    %v748 = vsel %vm645, %v740, -1e+30
    %v749 = vsel %vm645, %v741, -1e+30
    %750 = vst [vmem:[#allocation5] sm:$0xff] %v742
    %751 = vst [vmem:[#allocation5 + $0x8] sm:$0xff] %v743
    %752 = vst [vmem:[#allocation5 + $0x10] sm:$0xff] %v744
    %753 = vst [vmem:[#allocation5 + $0x18] sm:$0xff] %v745
    %754 = vst [vmem:[#allocation5 + $0x20] sm:$0xff] %v746
    %755 = vst [vmem:[#allocation5 + $0x28] sm:$0xff] %v747
    %756 = vst [vmem:[#allocation5 + $0x30] sm:$0xff] %v748
    %757 = vst [vmem:[#allocation5 + $0x38] sm:$0xff] %v749
    // Predicated region
    $region30: #{tpu_custom_call.1} parent=1 // pred_check
      _
    $region31: #{tpu_custom_call.1} parent=1 // pred_check_branch
      %759 = sbr.rel (0) target = $region33
    $region32: #{tpu_custom_call.1} parent=1 // pred_region
      %s761 = ssub.s32 1024, 1024
      %762 = vsyncadd [#allocation4], %s761
      %s763 = sshll.u32 [#allocation5], 4
      %s764 = int_to_ptr.vmem [resolvable:$true] %s763
      %769 = dma.vmem_to_hbm [thread:$0]  %s764, 1024, %s6, [#allocation4], 128, 128, 8
    $region33: #{tpu_custom_call.1} parent=1 // pred_fallthru
      _
    // Predicated region
    $region34: #{tpu_custom_call.1} parent=1 // pred_check
      _
    $region35: #{tpu_custom_call.1} parent=1 // pred_check_branch
      %771 = sbr.rel (0) target = $region37
    $region36: #{tpu_custom_call.1} parent=1 // pred_region
      %772 = dma.done [#allocation4], 1024
    $region37: #{tpu_custom_call.1} parent=1 // pred_fallthru
      _
    %773 = vsyncpa [#allocation3], 1
    %774 = vsyncpa [#allocation4], 1

</llo_original>
